<compile_context>
chip_gen: v6e
topology: v6e:2x2x1
jax: 0.10.0
libtpu: 0.0.40
codegen_flags: <defaults>
</compile_context>

<pallas_src>
import functools

import jax
import jax.numpy as jnp
from jax.experimental import pallas as pl
from jax.experimental.pallas import tpu as pltpu

IN_FEATS = 4 * 12 * 17   # 816
HID = 32
HID_PAD = 128            # lane-dense hidden dim


def _round_up(x, m):
    return (x + m - 1) // m * m


def _choose_batch_tile(B):
    """Generation-aware batch tile.  Keeps grid*tb ~= B (no full-tile batch
    padding) and, on v7x (2 TensorCores / 64 MiB VMEM), prefers >= 4 grid
    steps so the 'parallel' batch axis can be sharded across both cores."""
    try:
        kind = jax.devices()[0].device_kind.lower()
    except Exception:
        kind = ""
    if "v6" in kind:
        tb_max, min_grid = 1024, 1
    elif "v5" in kind:
        tb_max, min_grid = 512, 1
    else:  # v7x and unknown
        tb_max, min_grid = 512, 4
    if B <= 8:
        return B                      # full-extent block (legal for B < 8)
    n_blocks = max(min_grid, pl.cdiv(B, tb_max))
    tb = _round_up(pl.cdiv(B, n_blocks), 8)
    return min(tb, tb_max)


def _mlp_kernel(x_ref, w1_ref, b1_ref, w2_ref, b2_ref, w4_ref, b4_ref, out_ref):
    """One (tb, 816) batch tile: y = relu(relu(x@w1+b1)@w2+b2)@w4+b4.
    All matmuls on the MXU with f32 accumulation; the f32->compute-dtype cast
    of x happens here in VMEM (no separate HBM copy); intermediates h1/h2
    never touch HBM."""
    x = x_ref[...].astype(w1_ref.dtype)                               # (tb, 816)
    h1 = jnp.dot(x, w1_ref[...], preferred_element_type=jnp.float32) + b1_ref[...]
    h1 = jnp.maximum(h1, 0.0)          # ReLU on the f32 accumulator
    h2 = jnp.dot(h1.astype(w2_ref.dtype), w2_ref[...],
                 preferred_element_type=jnp.float32) + b2_ref[...]
    h2 = jnp.maximum(h2, 0.0)
    y = jnp.dot(h2.astype(w4_ref.dtype), w4_ref[...],
                preferred_element_type=jnp.float32) + b4_ref[...]
    out_ref[...] = y.astype(out_ref.dtype)                            # (tb, 816)


def prepare_params(params, compute_dtype=jnp.bfloat16):
    """One-time (per model) padding/cast of the weights, hoisted out of the
    forward.  Hidden dim 32 -> 128 zero-padded (zero bias + ReLU(0) = 0, so
    the padded lanes contribute exactly 0); biases stay f32."""
    w1, b1, w2, b2, w4, b4 = params
    pad_h = HID_PAD - HID
    w1p = jnp.pad(w1, ((0, 0), (0, pad_h))).astype(compute_dtype)       # (816, 128)
    b1p = jnp.pad(b1, ((0, 0), (0, pad_h)))                             # (1, 128) f32
    w2p = jnp.pad(w2, ((0, pad_h), (0, pad_h))).astype(compute_dtype)   # (128, 128)
    b2p = jnp.pad(b2, ((0, 0), (0, pad_h)))                             # (1, 128) f32
    w4p = jnp.pad(w4, ((0, pad_h), (0, 0))).astype(compute_dtype)       # (128, 816)
    b4p = b4                                                            # (1, 816) f32
    return (w1p, b1p, w2p, b2p, w4p, b4p)


def saccade_shift_forward(latent_input, saccade_input, prepared_params,
                          out_dtype=jnp.float32, batch_tile=None):
    """latent_input: (B, 4, 12, 17); saccade_input unused (dead in reference)."""
    del saccade_input  # dead code in the reference forward
    B = latent_input.shape[0]
    w1p, b1p, w2p, b2p, w4p, b4p = prepared_params

    tb = batch_tile if batch_tile is not None else _choose_batch_tile(B)
    if B < 8:
        tb = B                                   # only legal sub-8 sublane tile
    else:
        tb = max(8, _round_up(min(tb, _round_up(B, 8)), 8))
    grid = (pl.cdiv(B, tb),)                     # ragged last block is OK

    # Raw f32 view of the input; no HBM-side cast/pad copy.
    x = latent_input.reshape(B, IN_FEATS)

    w_itemsize = jnp.dtype(w1p.dtype).itemsize
    weight_bytes = ((w1p.size + w2p.size + w4p.size) * w_itemsize
                    + (b1p.size + b2p.size + b4p.size) * 4)
    cost = pl.CostEstimate(
        flops=2 * B * (IN_FEATS * HID_PAD + HID_PAD * HID_PAD + HID_PAD * IN_FEATS),
        transcendentals=0,
        bytes_accessed=B * IN_FEATS * (latent_input.dtype.itemsize
                                       + jnp.dtype(out_dtype).itemsize)
                       + weight_bytes,
    )

    out_flat = pl.pallas_call(
        _mlp_kernel,
        out_shape=jax.ShapeDtypeStruct((B, IN_FEATS), out_dtype),
        grid_spec=pltpu.PrefetchScalarGridSpec(
            num_scalar_prefetch=0,
            grid=grid,
            in_specs=[
                pl.BlockSpec((tb, IN_FEATS), lambda i: (i, 0)),          # x tile
                pl.BlockSpec((IN_FEATS, HID_PAD), lambda i: (0, 0)),     # w1 (resident)
                pl.BlockSpec((1, HID_PAD), lambda i: (0, 0)),            # b1
                pl.BlockSpec((HID_PAD, HID_PAD), lambda i: (0, 0)),      # w2
                pl.BlockSpec((1, HID_PAD), lambda i: (0, 0)),            # b2
                pl.BlockSpec((HID_PAD, IN_FEATS), lambda i: (0, 0)),     # w4
                pl.BlockSpec((1, IN_FEATS), lambda i: (0, 0)),           # b4
            ],
            out_specs=pl.BlockSpec((tb, IN_FEATS), lambda i: (i, 0)),
        ),
        compiler_params=pltpu.CompilerParams(
            dimension_semantics=("parallel",),   # batch axis -> megacore on v7x
            vmem_limit_bytes=32 * 1024 * 1024,   # headroom on v7x's 64 MiB VMEM
        ),
        cost_estimate=cost,
    )(x, w1p, b1p, w2p, b2p, w4p, b4p)

    return out_flat.reshape(B, 4, 12, 17)        # free reshape (row-major view)


def init_params(key):
    """Deterministic init mimicking PyTorch nn.Linear (uniform +-1/sqrt(fan_in)).
    Weights stored as (in, out) = transpose of PyTorch's (out, in)."""
    def linear(k, fan_in, fan_out):
        kw, kb = jax.random.split(k)
        bound = 1.0 / jnp.sqrt(fan_in)
        w = jax.random.uniform(kw, (fan_in, fan_out), jnp.float32, -bound, bound)
        b = jax.random.uniform(kb, (1, fan_out), jnp.float32, -bound, bound)
        return w, b

    k1, k2, k4 = jax.random.split(key, 3)
    w1, b1 = linear(k1, IN_FEATS, HID)    # combine_fc : 816 -> 32
    w2, b2 = linear(k2, HID, HID)         # combine_fc2: 32 -> 32
    w4, b4 = linear(k4, HID, IN_FEATS)    # combine_fc4: 32 -> 816
    return (w1, b1, w2, b2, w4, b4)


def reference_forward(latent_input, params):
    """Pure-JAX f32 reference of the live path of the PyTorch forward."""
    w1, b1, w2, b2, w4, b4 = params
    x = latent_input.reshape(latent_input.shape[0], -1)
    h = jnp.maximum(jnp.dot(x, w1, preferred_element_type=jnp.float32) + b1, 0.0)
    h = jnp.maximum(jnp.dot(h, w2, preferred_element_type=jnp.float32) + b2, 0.0)
    y = jnp.dot(h, w4, preferred_element_type=jnp.float32) + b4
    return y.reshape(-1, 4, 12, 17)


if __name__ == "__main__":
    key = jax.random.PRNGKey(0)
    k_params, k_lat, k_sac = jax.random.split(key, 3)

    B = 2
    latent_input = jax.random.normal(k_lat, (B, 4, 12, 17), jnp.float32)
    saccade_input = jax.random.normal(k_sac, (B, 3), jnp.float32)
    params = init_params(k_params)

    fwd = jax.jit(saccade_shift_forward,
                  static_argnames=("out_dtype", "batch_tile"))

    # Full-precision weights: matches the f32 reference tightly.
    prep_f32 = prepare_params(params, compute_dtype=jnp.float32)
    out_f32 = jax.block_until_ready(fwd(latent_input, saccade_input, prep_f32))
    ref = reference_forward(latent_input, params)
    assert out_f32.shape == (B, 4, 12, 17), out_f32.shape
    assert jnp.allclose(out_f32, ref, atol=1e-4, rtol=1e-4), "f32 mismatch"

    # Default bf16 weights (f32 MXU accumulation): loose match vs f32 reference.
    prep_bf16 = prepare_params(params)
    out_bf16 = jax.block_until_ready(fwd(latent_input, saccade_input, prep_bf16))
    assert jnp.allclose(out_bf16, ref, atol=5e-2, rtol=5e-2), "bf16 drift"

    # Multi-step grid with a ragged last batch block (B not a tile multiple).
    B2 = 25
    lat2 = jax.random.normal(jax.random.PRNGKey(1), (B2, 4, 12, 17), jnp.float32)
    sac2 = jnp.zeros((B2, 3), jnp.float32)
    out2 = jax.block_until_ready(fwd(lat2, sac2, prep_f32, batch_tile=8))
    ref2 = reference_forward(lat2, params)
    assert out2.shape == (B2, 4, 12, 17), out2.shape
    assert jnp.allclose(out2, ref2, atol=1e-4, rtol=1e-4), "ragged-grid mismatch"

    print("KERNEL_OK")
</pallas_src>

<mosaic_0001>
module attributes {stable_mosaic.version = 11 : i64} {
  func.func @_mlp_kernel(%arg0: i32, %arg1: memref<2x816xf32, #tpu.memory_space<vmem>>, %arg2: memref<816x128xf32, #tpu.memory_space<vmem>>, %arg3: memref<1x128xf32, #tpu.memory_space<vmem>>, %arg4: memref<128x128xf32, #tpu.memory_space<vmem>>, %arg5: memref<1x128xf32, #tpu.memory_space<vmem>>, %arg6: memref<128x816xf32, #tpu.memory_space<vmem>>, %arg7: memref<1x816xf32, #tpu.memory_space<vmem>>, %arg8: memref<2x816xf32, #tpu.memory_space<vmem>>) attributes {dimension_semantics = [#tpu.dimension_semantics<parallel>], iteration_bounds = array<i64: 1>, scalar_prefetch = 0 : i64, scratch_operands = 0 : i64, tpu.core_type = #tpu.core_type<tc>, window_params = [{transform_indices = @transform_0, window_bounds = array<i64: 2, 816>}, {pipeline_mode = #tpu.pipeline_mode<synchronous>, transform_indices = @transform_1, window_bounds = array<i64: 816, 128>}, {pipeline_mode = #tpu.pipeline_mode<synchronous>, transform_indices = @transform_2, window_bounds = array<i64: 1, 128>}, {pipeline_mode = #tpu.pipeline_mode<synchronous>, transform_indices = @transform_3, window_bounds = array<i64: 128, 128>}, {pipeline_mode = #tpu.pipeline_mode<synchronous>, transform_indices = @transform_4, window_bounds = array<i64: 1, 128>}, {pipeline_mode = #tpu.pipeline_mode<synchronous>, transform_indices = @transform_5, window_bounds = array<i64: 128, 816>}, {pipeline_mode = #tpu.pipeline_mode<synchronous>, transform_indices = @transform_6, window_bounds = array<i64: 1, 816>}, {transform_indices = @transform_7, window_bounds = array<i64: 2, 816>}]} {
    %c0 = arith.constant 0 : index
    %c0_0 = arith.constant 0 : index
    %0 = vector.load %arg1[%c0, %c0_0] : memref<2x816xf32, #tpu.memory_space<vmem>>, vector<2x816xf32>
    %c0_1 = arith.constant 0 : index
    %c0_2 = arith.constant 0 : index
    %1 = vector.load %arg2[%c0_1, %c0_2] : memref<816x128xf32, #tpu.memory_space<vmem>>, vector<816x128xf32>
    %cst = arith.constant dense<0.000000e+00> : vector<2x128xf32>
    %2 = tpu.matmul %0, %1, %cst {dimension_numbers = #tpu.dot_dimension_numbers<[1], [0], [0], [1], [0, 0, 1, 1], [], []>} : vector<2x816xf32>, vector<816x128xf32>, vector<2x128xf32> -> vector<2x128xf32>
    %c0_3 = arith.constant 0 : index
    %c0_4 = arith.constant 0 : index
    %3 = vector.load %arg3[%c0_3, %c0_4] : memref<1x128xf32, #tpu.memory_space<vmem>>, vector<1x128xf32>
    %4 = vector.broadcast %3 : vector<1x128xf32> to vector<2x128xf32>
    %5 = arith.addf %2, %4 : vector<2x128xf32>
    %cst_5 = arith.constant 0.000000e+00 : f32
    %6 = vector.broadcast %cst_5 : f32 to vector<2x128xf32>
    %7 = arith.maximumf %5, %6 : vector<2x128xf32>
    %c0_6 = arith.constant 0 : index
    %c0_7 = arith.constant 0 : index
    %8 = vector.load %arg4[%c0_6, %c0_7] : memref<128x128xf32, #tpu.memory_space<vmem>>, vector<128x128xf32>
    %cst_8 = arith.constant dense<0.000000e+00> : vector<2x128xf32>
    %9 = tpu.matmul %7, %8, %cst_8 {dimension_numbers = #tpu.dot_dimension_numbers<[1], [0], [0], [1], [0, 0, 1, 1], [], []>} : vector<2x128xf32>, vector<128x128xf32>, vector<2x128xf32> -> vector<2x128xf32>
    %c0_9 = arith.constant 0 : index
    %c0_10 = arith.constant 0 : index
    %10 = vector.load %arg5[%c0_9, %c0_10] : memref<1x128xf32, #tpu.memory_space<vmem>>, vector<1x128xf32>
    %11 = vector.broadcast %10 : vector<1x128xf32> to vector<2x128xf32>
    %12 = arith.addf %9, %11 : vector<2x128xf32>
    %cst_11 = arith.constant 0.000000e+00 : f32
    %13 = vector.broadcast %cst_11 : f32 to vector<2x128xf32>
    %14 = arith.maximumf %12, %13 : vector<2x128xf32>
    %c0_12 = arith.constant 0 : index
    %c0_13 = arith.constant 0 : index
    %15 = vector.load %arg6[%c0_12, %c0_13] : memref<128x816xf32, #tpu.memory_space<vmem>>, vector<128x816xf32>
    %cst_14 = arith.constant dense<0.000000e+00> : vector<2x816xf32>
    %16 = tpu.matmul %14, %15, %cst_14 {dimension_numbers = #tpu.dot_dimension_numbers<[1], [0], [0], [1], [0, 0, 1, 1], [], []>} : vector<2x128xf32>, vector<128x816xf32>, vector<2x816xf32> -> vector<2x816xf32>
    %c0_15 = arith.constant 0 : index
    %c0_16 = arith.constant 0 : index
    %17 = vector.load %arg7[%c0_15, %c0_16] : memref<1x816xf32, #tpu.memory_space<vmem>>, vector<1x816xf32>
    %18 = vector.broadcast %17 : vector<1x816xf32> to vector<2x816xf32>
    %19 = arith.addf %16, %18 : vector<2x816xf32>
    %c0_17 = arith.constant 0 : index
    %c0_18 = arith.constant 0 : index
    %20 = vector.load %arg8[%c0_17, %c0_18] : memref<2x816xf32, #tpu.memory_space<vmem>>, vector<2x816xf32>
    tpu.vector_store %arg8[%c0_17, %c0_18], %19 {strides = array<i32>} : memref<2x816xf32, #tpu.memory_space<vmem>>, vector<2x816xf32>,
    return
  }
  func.func @transform_0(%arg0: i32) -> (i32, i32) {
    %c0_i32 = arith.constant 0 : i32
    %c0_i32_0 = arith.constant 0 : i32
    return %arg0, %c0_i32 : i32, i32
  }
  func.func @transform_1(%arg0: i32) -> (i32, i32) {
    %c0_i32 = arith.constant 0 : i32
    %c0_i32_0 = arith.constant 0 : i32
    %c0_i32_1 = arith.constant 0 : i32
    return %c0_i32, %c0_i32_0 : i32, i32
  }
  func.func @transform_2(%arg0: i32) -> (i32, i32) {
    %c0_i32 = arith.constant 0 : i32
    %c0_i32_0 = arith.constant 0 : i32
    %c0_i32_1 = arith.constant 0 : i32
    return %c0_i32, %c0_i32_0 : i32, i32
  }
  func.func @transform_3(%arg0: i32) -> (i32, i32) {
    %c0_i32 = arith.constant 0 : i32
    %c0_i32_0 = arith.constant 0 : i32
    %c0_i32_1 = arith.constant 0 : i32
    return %c0_i32, %c0_i32_0 : i32, i32
  }
  func.func @transform_4(%arg0: i32) -> (i32, i32) {
    %c0_i32 = arith.constant 0 : i32
    %c0_i32_0 = arith.constant 0 : i32
    %c0_i32_1 = arith.constant 0 : i32
    return %c0_i32, %c0_i32_0 : i32, i32
  }
  func.func @transform_5(%arg0: i32) -> (i32, i32) {
    %c0_i32 = arith.constant 0 : i32
    %c0_i32_0 = arith.constant 0 : i32
    %c0_i32_1 = arith.constant 0 : i32
    return %c0_i32, %c0_i32_0 : i32, i32
  }
  func.func @transform_6(%arg0: i32) -> (i32, i32) {
    %c0_i32 = arith.constant 0 : i32
    %c0_i32_0 = arith.constant 0 : i32
    %c0_i32_1 = arith.constant 0 : i32
    return %c0_i32, %c0_i32_0 : i32, i32
  }
  func.func @transform_7(%arg0: i32) -> (i32, i32) {
    %c0_i32 = arith.constant 0 : i32
    %c0_i32_0 = arith.constant 0 : i32
    return %arg0, %c0_i32 : i32, i32
  }
}

</mosaic_0001>

<llo_original>
// kernel: saccade_shift_forward.1
$region0: #{saccade_shift_forward.1}
  #allocation0 [shape = 'u32[]', space=smem, size = 0x4, offset = 0x4, fixed_abs, tag = 'smem constant byte address 0x4 - core index']
  #allocation1 [shape = 'u32[144,128]{1,0:T(1,128)}', space=vmem, size = 0x12000, scoped, tag = 'internal scratch']
  %s0 = inlined_call_operand.vmem [shape: f32[2,816], index: 0, kind: input, shape index: {}]
  %s1 = inlined_call_operand.vmem [shape: f32[816,128], index: 1, kind: input, shape index: {}]
  %s2 = inlined_call_operand.vmem [shape: f32[1,128], index: 2, kind: input, shape index: {}]
  %s3 = inlined_call_operand.vmem [shape: f32[128,128], index: 3, kind: input, shape index: {}]
  %s4 = inlined_call_operand.vmem [shape: f32[1,128], index: 4, kind: input, shape index: {}]
  %s5 = inlined_call_operand.vmem [shape: f32[128,816], index: 5, kind: input, shape index: {}]
  %s6 = inlined_call_operand.vmem [shape: f32[1,816], index: 6, kind: input, shape index: {}]
  %s7 = inlined_call_operand.vmem [shape: f32[2,816], index: 7, kind: output, shape index: {}]
  %s8 = sld [smem:[#allocation0]]
  $region38: #{saccade_shift_forward.1} parent=0
    _
  %s10 = ssub.s32 1, %s8
  %s11 = scalar_select 0, %s10, %s8
  // Predicated region
  $region2: #{saccade_shift_forward.1} parent=0 // pred_check
    _
  $region3: #{saccade_shift_forward.1} parent=0 // pred_check_branch
    %13 = sbr.rel (0) target = $region5
  $region4: #{saccade_shift_forward.1} parent=0 // pred_region
    _
  $region5: #{saccade_shift_forward.1} parent=0 // pred_fallthru
    _
  // Predicated region
  $region6: #{saccade_shift_forward.1} parent=0 // pred_check
    _
  $region7: #{saccade_shift_forward.1} parent=0 // pred_check_branch
    %15 = sbr.rel (0) target = $region9
  $region8: #{saccade_shift_forward.1} parent=0 // pred_region
    _
  $region9: #{saccade_shift_forward.1} parent=0 // pred_fallthru
    _
  // Predicated region
  $region10: #{saccade_shift_forward.1} parent=0 // pred_check
    _
  $region11: #{saccade_shift_forward.1} parent=0 // pred_check_branch
    %17 = sbr.rel (0) target = $region13
  $region12: #{saccade_shift_forward.1} parent=0 // pred_region
    _
  $region13: #{saccade_shift_forward.1} parent=0 // pred_fallthru
    _
  // Predicated region
  $region14: #{saccade_shift_forward.1} parent=0 // pred_check
    _
  $region15: #{saccade_shift_forward.1} parent=0 // pred_check_branch
    %19 = sbr.rel (0) target = $region17
  $region16: #{saccade_shift_forward.1} parent=0 // pred_region
    _
  $region17: #{saccade_shift_forward.1} parent=0 // pred_fallthru
    _
  // Predicated region
  $region18: #{saccade_shift_forward.1} parent=0 // pred_check
    _
  $region19: #{saccade_shift_forward.1} parent=0 // pred_check_branch
    %21 = sbr.rel (0) target = $region21
  $region20: #{saccade_shift_forward.1} parent=0 // pred_region
    _
  $region21: #{saccade_shift_forward.1} parent=0 // pred_fallthru
    _
  // Predicated region
  $region22: #{saccade_shift_forward.1} parent=0 // pred_check
    _
  $region23: #{saccade_shift_forward.1} parent=0 // pred_check_branch
    %23 = sbr.rel (0) target = $region25
  $region24: #{saccade_shift_forward.1} parent=0 // pred_region
    _
  $region25: #{saccade_shift_forward.1} parent=0 // pred_fallthru
    _
  // Predicated region
  $region26: #{saccade_shift_forward.1} parent=0 // pred_check
    _
  $region27: #{saccade_shift_forward.1} parent=0 // pred_check_branch
    %25 = sbr.rel (0) target = $region29
  $region28: #{saccade_shift_forward.1} parent=0 // pred_region
    _
  $region29: #{saccade_shift_forward.1} parent=0 // pred_fallthru
    _
  %v26 = vld [vmem:[%s0] sm:$0xff]
  %v27 = vld [vmem:[%s0 + $0x8] sm:$0x3f]
  %v28 = vld [vmem:[%s1] sm:$0xff]
  %v29 = vld [vmem:[%s1 + $0x8] sm:$0xff]
  %v30 = vld [vmem:[%s1 + $0x10] sm:$0xff]
  %v31 = vld [vmem:[%s1 + $0x18] sm:$0xff]
  %v32 = vld [vmem:[%s1 + $0x20] sm:$0xff]
  %v33 = vld [vmem:[%s1 + $0x28] sm:$0xff]
  %v34 = vld [vmem:[%s1 + $0x30] sm:$0xff]
  %v35 = vld [vmem:[%s1 + $0x38] sm:$0xff]
  %v36 = vld [vmem:[%s1 + $0x40] sm:$0xff]
  %v37 = vld [vmem:[%s1 + $0x48] sm:$0xff]
  %v38 = vld [vmem:[%s1 + $0x50] sm:$0xff]
  %v39 = vld [vmem:[%s1 + $0x58] sm:$0xff]
  %v40 = vld [vmem:[%s1 + $0x60] sm:$0xff]
  %v41 = vld [vmem:[%s1 + $0x68] sm:$0xff]
  %v42 = vld [vmem:[%s1 + $0x70] sm:$0xff]
  %v43 = vld [vmem:[%s1 + $0x78] sm:$0xff]
  %v44 = vld [vmem:[%s1 + $0x80] sm:$0xff]
  %v45 = vld [vmem:[%s1 + $0x88] sm:$0xff]
  %v46 = vld [vmem:[%s1 + $0x90] sm:$0xff]
  %v47 = vld [vmem:[%s1 + $0x98] sm:$0xff]
  %v48 = vld [vmem:[%s1 + $0xa0] sm:$0xff]
  %v49 = vld [vmem:[%s1 + $0xa8] sm:$0xff]
  %v50 = vld [vmem:[%s1 + $0xb0] sm:$0xff]
  %v51 = vld [vmem:[%s1 + $0xb8] sm:$0xff]
  %v52 = vld [vmem:[%s1 + $0xc0] sm:$0xff]
  %v53 = vld [vmem:[%s1 + $0xc8] sm:$0xff]
  %v54 = vld [vmem:[%s1 + $0xd0] sm:$0xff]
  %v55 = vld [vmem:[%s1 + $0xd8] sm:$0xff]
  %v56 = vld [vmem:[%s1 + $0xe0] sm:$0xff]
  %v57 = vld [vmem:[%s1 + $0xe8] sm:$0xff]
  %v58 = vld [vmem:[%s1 + $0xf0] sm:$0xff]
  %v59 = vld [vmem:[%s1 + $0xf8] sm:$0xff]
  %v60 = vld [vmem:[%s1 + $0x100] sm:$0xff]
  %v61 = vld [vmem:[%s1 + $0x108] sm:$0xff]
  %v62 = vld [vmem:[%s1 + $0x110] sm:$0xff]
  %v63 = vld [vmem:[%s1 + $0x118] sm:$0xff]
  %v64 = vld [vmem:[%s1 + $0x120] sm:$0xff]
  %v65 = vld [vmem:[%s1 + $0x128] sm:$0xff]
  %v66 = vld [vmem:[%s1 + $0x130] sm:$0xff]
  %v67 = vld [vmem:[%s1 + $0x138] sm:$0xff]
  %v68 = vld [vmem:[%s1 + $0x140] sm:$0xff]
  %v69 = vld [vmem:[%s1 + $0x148] sm:$0xff]
  %v70 = vld [vmem:[%s1 + $0x150] sm:$0xff]
  %v71 = vld [vmem:[%s1 + $0x158] sm:$0xff]
  %v72 = vld [vmem:[%s1 + $0x160] sm:$0xff]
  %v73 = vld [vmem:[%s1 + $0x168] sm:$0xff]
  %v74 = vld [vmem:[%s1 + $0x170] sm:$0xff]
  %v75 = vld [vmem:[%s1 + $0x178] sm:$0xff]
  %v76 = vld [vmem:[%s1 + $0x180] sm:$0xff]
  %v77 = vld [vmem:[%s1 + $0x188] sm:$0xff]
  %v78 = vld [vmem:[%s1 + $0x190] sm:$0xff]
  %v79 = vld [vmem:[%s1 + $0x198] sm:$0xff]
  %v80 = vld [vmem:[%s1 + $0x1a0] sm:$0xff]
  %v81 = vld [vmem:[%s1 + $0x1a8] sm:$0xff]
  %v82 = vld [vmem:[%s1 + $0x1b0] sm:$0xff]
  %v83 = vld [vmem:[%s1 + $0x1b8] sm:$0xff]
  %v84 = vld [vmem:[%s1 + $0x1c0] sm:$0xff]
  %v85 = vld [vmem:[%s1 + $0x1c8] sm:$0xff]
  %v86 = vld [vmem:[%s1 + $0x1d0] sm:$0xff]
  %v87 = vld [vmem:[%s1 + $0x1d8] sm:$0xff]
  %v88 = vld [vmem:[%s1 + $0x1e0] sm:$0xff]
  %v89 = vld [vmem:[%s1 + $0x1e8] sm:$0xff]
  %v90 = vld [vmem:[%s1 + $0x1f0] sm:$0xff]
  %v91 = vld [vmem:[%s1 + $0x1f8] sm:$0xff]
  %v92 = vld [vmem:[%s1 + $0x200] sm:$0xff]
  %v93 = vld [vmem:[%s1 + $0x208] sm:$0xff]
  %v94 = vld [vmem:[%s1 + $0x210] sm:$0xff]
  %v95 = vld [vmem:[%s1 + $0x218] sm:$0xff]
  %v96 = vld [vmem:[%s1 + $0x220] sm:$0xff]
  %v97 = vld [vmem:[%s1 + $0x228] sm:$0xff]
  %v98 = vld [vmem:[%s1 + $0x230] sm:$0xff]
  %v99 = vld [vmem:[%s1 + $0x238] sm:$0xff]
  %v100 = vld [vmem:[%s1 + $0x240] sm:$0xff]
  %v101 = vld [vmem:[%s1 + $0x248] sm:$0xff]
  %v102 = vld [vmem:[%s1 + $0x250] sm:$0xff]
  %v103 = vld [vmem:[%s1 + $0x258] sm:$0xff]
  %v104 = vld [vmem:[%s1 + $0x260] sm:$0xff]
  %v105 = vld [vmem:[%s1 + $0x268] sm:$0xff]
  %v106 = vld [vmem:[%s1 + $0x270] sm:$0xff]
  %v107 = vld [vmem:[%s1 + $0x278] sm:$0xff]
  %v108 = vld [vmem:[%s1 + $0x280] sm:$0xff]
  %v109 = vld [vmem:[%s1 + $0x288] sm:$0xff]
  %v110 = vld [vmem:[%s1 + $0x290] sm:$0xff]
  %v111 = vld [vmem:[%s1 + $0x298] sm:$0xff]
  %v112 = vld [vmem:[%s1 + $0x2a0] sm:$0xff]
  %v113 = vld [vmem:[%s1 + $0x2a8] sm:$0xff]
  %v114 = vld [vmem:[%s1 + $0x2b0] sm:$0xff]
  %v115 = vld [vmem:[%s1 + $0x2b8] sm:$0xff]
  %v116 = vld [vmem:[%s1 + $0x2c0] sm:$0xff]
  %v117 = vld [vmem:[%s1 + $0x2c8] sm:$0xff]
  %v118 = vld [vmem:[%s1 + $0x2d0] sm:$0xff]
  %v119 = vld [vmem:[%s1 + $0x2d8] sm:$0xff]
  %v120 = vld [vmem:[%s1 + $0x2e0] sm:$0xff]
  %v121 = vld [vmem:[%s1 + $0x2e8] sm:$0xff]
  %v122 = vld [vmem:[%s1 + $0x2f0] sm:$0xff]
  %v123 = vld [vmem:[%s1 + $0x2f8] sm:$0xff]
  %v124 = vld [vmem:[%s1 + $0x300] sm:$0xff]
  %v125 = vld [vmem:[%s1 + $0x308] sm:$0xff]
  %v126 = vld [vmem:[%s1 + $0x310] sm:$0xff]
  %v127 = vld [vmem:[%s1 + $0x318] sm:$0xff]
  %v128 = vld [vmem:[%s1 + $0x320] sm:$0xff]
  %v129 = vld [vmem:[%s1 + $0x328] sm:$0xff]
  %v130 = vld [vmem:[%s2] sm:$0x1]
  %v132 = vlaneseq
  %v133 = vshrl.u32 %v132, 7
  %v134 = vsub.s32 0, %v133
  %v135 = vrot.slane %v130, %v134
  %v139 = vcombine.high %v26, %v26
  %v141 = vunpack.c.l.s4 1983009808
  %v142 = vunpack.c.0.s8 %v141
  %v143 = vlaneseq
  %v144 = vshrl.u32 %v143, 7
  %v145 = vsub.s32 %v142, %v144
  %v146 = vrot.slane %v26, %v145
  %v148 = vunpack.c.l.s4 1983009808
  %v149 = vunpack.c.0.s8 %v148
  %v150 = vlaneseq
  %v151 = vshrl.u32 %v150, 7
  %v152 = vsub.s32 %v149, %v151
  %v153 = vrot.slane %v139, %v152
  %v154 = vcombine.high %v146, %v146
  %v155 = vcombine.high %v153, %v153
  %v156 = vcombine.high %v27, %v27
  %v158 = vunpack.c.l.s4 1983009808
  %v159 = vunpack.c.0.s8 %v158
  %v160 = vlaneseq
  %v161 = vshrl.u32 %v160, 7
  %v162 = vsub.s32 %v159, %v161
  %v163 = vrot.slane %v27, %v162
  %v165 = vunpack.c.l.s4 1983009808
  %v166 = vunpack.c.0.s8 %v165
  %v167 = vlaneseq
  %v168 = vshrl.u32 %v167, 7
  %v169 = vsub.s32 %v166, %v168
  %v170 = vrot.slane %v156, %v169
  %v171 = vcombine.high %v163, %v163
  %vm178 = vcmask 392192
  %v179 = vsel %vm178, %v170, 0
  %181 = vmatprep.subr.mxu0 0.0
  %182 = vmatpush1.msra.mxu0 %v43
  %183 = vmatprep.subr.mxu0 0.0
  %184 = vmatpush1.msra.mxu0 %v42
  %185 = vmatprep.subr.mxu0 0.0
  %186 = vmatpush1.msra.mxu0 %v41
  %187 = vmatprep.subr.mxu0 0.0
  %188 = vmatpush1.msra.mxu0 %v40
  %189 = vmatprep.subr.mxu0 0.0
  %190 = vmatpush1.msra.mxu0 %v39
  %191 = vmatprep.subr.mxu0 0.0
  %192 = vmatpush1.msra.mxu0 %v38
  %193 = vmatprep.subr.mxu0 0.0
  %194 = vmatpush1.msra.mxu0 %v37
  %195 = vmatprep.subr.mxu0 0.0
  %196 = vmatpush1.msra.mxu0 %v36
  %197 = vmatprep.subr.mxu0 0.0
  %198 = vmatpush1.msra.mxu0 %v35
  %199 = vmatprep.subr.mxu0 0.0
  %200 = vmatpush1.msra.mxu0 %v34
  %201 = vmatprep.subr.mxu0 0.0
  %202 = vmatpush1.msra.mxu0 %v33
  %203 = vmatprep.subr.mxu0 0.0
  %204 = vmatpush1.msra.mxu0 %v32
  %205 = vmatprep.subr.mxu0 0.0
  %206 = vmatpush1.msra.mxu0 %v31
  %207 = vmatprep.subr.mxu0 0.0
  %208 = vmatpush1.msra.mxu0 %v30
  %209 = vmatprep.subr.mxu0 0.0
  %210 = vmatpush1.msra.mxu0 %v29
  %211 = vmatprep.subr.mxu0 0.0
  %212 = vmatpush1.msra.mxu0 %v28
  %213 = vmatprep.subr.mxu0 0.0
  %214 = vmatpush2.msra.mxu0 %v59
  %215 = vmatprep.subr.mxu0 0.0
  %216 = vmatpush2.msra.mxu0 %v58
  %217 = vmatprep.subr.mxu0 0.0
  %218 = vmatpush2.msra.mxu0 %v57
  %219 = vmatprep.subr.mxu0 0.0
  %220 = vmatpush2.msra.mxu0 %v56
  %221 = vmatprep.subr.mxu0 0.0
  %222 = vmatpush2.msra.mxu0 %v55
  %223 = vmatprep.subr.mxu0 0.0
  %224 = vmatpush2.msra.mxu0 %v54
  %225 = vmatprep.subr.mxu0 0.0
  %226 = vmatpush2.msra.mxu0 %v53
  %227 = vmatprep.subr.mxu0 0.0
  %228 = vmatpush2.msra.mxu0 %v52
  %229 = vmatprep.subr.mxu0 0.0
  %230 = vmatpush2.msra.mxu0 %v51
  %231 = vmatprep.subr.mxu0 0.0
  %232 = vmatpush2.msra.mxu0 %v50
  %233 = vmatprep.subr.mxu0 0.0
  %234 = vmatpush2.msra.mxu0 %v49
  %235 = vmatprep.subr.mxu0 0.0
  %236 = vmatpush2.msra.mxu0 %v48
  %237 = vmatprep.subr.mxu0 0.0
  %238 = vmatpush2.msra.mxu0 %v47
  %239 = vmatprep.subr.mxu0 0.0
  %240 = vmatpush2.msra.mxu0 %v46
  %241 = vmatprep.subr.mxu0 0.0
  %242 = vmatpush2.msra.mxu0 %v45
  %243 = vmatprep.subr.mxu0 0.0
  %244 = vmatpush2.msra.mxu0 %v44
  %245 = vmatprep.mubr.f32.mxu0 %v154
  %246 = vmatmul.mubr.f32.gmra.mxu0 %v146
  %v247 = vpop.f32.mrf.mxu0
  %v248 = vadd.f32 %v135, %v247
  %v249 = vpop.f32.mrf.mxu0
  %250 = vdwg.mxu0
  %251 = vmatprep.subr.mxu0 0.0
  %252 = vmatpush1.msra.mxu0 %v75
  %253 = vmatprep.subr.mxu0 0.0
  %254 = vmatpush1.msra.mxu0 %v74
  %255 = vmatprep.subr.mxu0 0.0
  %256 = vmatpush1.msra.mxu0 %v73
  %257 = vmatprep.subr.mxu0 0.0
  %258 = vmatpush1.msra.mxu0 %v72
  %259 = vmatprep.subr.mxu0 0.0
  %260 = vmatpush1.msra.mxu0 %v71
  %261 = vmatprep.subr.mxu0 0.0
  %262 = vmatpush1.msra.mxu0 %v70
  %263 = vmatprep.subr.mxu0 0.0
  %264 = vmatpush1.msra.mxu0 %v69
  %265 = vmatprep.subr.mxu0 0.0
  %266 = vmatpush1.msra.mxu0 %v68
  %267 = vmatprep.subr.mxu0 0.0
  %268 = vmatpush1.msra.mxu0 %v67
  %269 = vmatprep.subr.mxu0 0.0
  %270 = vmatpush1.msra.mxu0 %v66
  %271 = vmatprep.subr.mxu0 0.0
  %272 = vmatpush1.msra.mxu0 %v65
  %273 = vmatprep.subr.mxu0 0.0
  %274 = vmatpush1.msra.mxu0 %v64
  %275 = vmatprep.subr.mxu0 0.0
  %276 = vmatpush1.msra.mxu0 %v63
  %277 = vmatprep.subr.mxu0 0.0
  %278 = vmatpush1.msra.mxu0 %v62
  %279 = vmatprep.subr.mxu0 0.0
  %280 = vmatpush1.msra.mxu0 %v61
  %281 = vmatprep.subr.mxu0 0.0
  %282 = vmatpush1.msra.mxu0 %v60
  %283 = vmatprep.subr.mxu0 0.0
  %284 = vmatpush2.msra.mxu0 %v91
  %285 = vmatprep.subr.mxu0 0.0
  %286 = vmatpush2.msra.mxu0 %v90
  %287 = vmatprep.subr.mxu0 0.0
  %288 = vmatpush2.msra.mxu0 %v89
  %289 = vmatprep.subr.mxu0 0.0
  %290 = vmatpush2.msra.mxu0 %v88
  %291 = vmatprep.subr.mxu0 0.0
  %292 = vmatpush2.msra.mxu0 %v87
  %293 = vmatprep.subr.mxu0 0.0
  %294 = vmatpush2.msra.mxu0 %v86
  %295 = vmatprep.subr.mxu0 0.0
  %296 = vmatpush2.msra.mxu0 %v85
  %297 = vmatprep.subr.mxu0 0.0
  %298 = vmatpush2.msra.mxu0 %v84
  %299 = vmatprep.subr.mxu0 0.0
  %300 = vmatpush2.msra.mxu0 %v83
  %301 = vmatprep.subr.mxu0 0.0
  %302 = vmatpush2.msra.mxu0 %v82
  %303 = vmatprep.subr.mxu0 0.0
  %304 = vmatpush2.msra.mxu0 %v81
  %305 = vmatprep.subr.mxu0 0.0
  %306 = vmatpush2.msra.mxu0 %v80
  %307 = vmatprep.subr.mxu0 0.0
  %308 = vmatpush2.msra.mxu0 %v79
  %309 = vmatprep.subr.mxu0 0.0
  %310 = vmatpush2.msra.mxu0 %v78
  %311 = vmatprep.subr.mxu0 0.0
  %312 = vmatpush2.msra.mxu0 %v77
  %313 = vmatprep.subr.mxu0 0.0
  %314 = vmatpush2.msra.mxu0 %v76
  %315 = vmatprep.mubr.f32.mxu0 %v155
  %316 = vmatmul.mubr.f32.gmra.mxu0 %v153
  %v317 = vpop.f32.mrf.mxu0
  %v318 = vadd.f32 %v248, %v317
  %v319 = vpop.f32.mrf.mxu0
  %320 = vdwg.mxu0
  %321 = vmatprep.subr.mxu0 0.0
  %322 = vmatpush1.msra.mxu0 %v107
  %323 = vmatprep.subr.mxu0 0.0
  %324 = vmatpush1.msra.mxu0 %v106
  %325 = vmatprep.subr.mxu0 0.0
  %326 = vmatpush1.msra.mxu0 %v105
  %327 = vmatprep.subr.mxu0 0.0
  %328 = vmatpush1.msra.mxu0 %v104
  %329 = vmatprep.subr.mxu0 0.0
  %330 = vmatpush1.msra.mxu0 %v103
  %331 = vmatprep.subr.mxu0 0.0
  %332 = vmatpush1.msra.mxu0 %v102
  %333 = vmatprep.subr.mxu0 0.0
  %334 = vmatpush1.msra.mxu0 %v101
  %335 = vmatprep.subr.mxu0 0.0
  %336 = vmatpush1.msra.mxu0 %v100
  %337 = vmatprep.subr.mxu0 0.0
  %338 = vmatpush1.msra.mxu0 %v99
  %339 = vmatprep.subr.mxu0 0.0
  %340 = vmatpush1.msra.mxu0 %v98
  %341 = vmatprep.subr.mxu0 0.0
  %342 = vmatpush1.msra.mxu0 %v97
  %343 = vmatprep.subr.mxu0 0.0
  %344 = vmatpush1.msra.mxu0 %v96
  %345 = vmatprep.subr.mxu0 0.0
  %346 = vmatpush1.msra.mxu0 %v95
  %347 = vmatprep.subr.mxu0 0.0
  %348 = vmatpush1.msra.mxu0 %v94
  %349 = vmatprep.subr.mxu0 0.0
  %350 = vmatpush1.msra.mxu0 %v93
  %351 = vmatprep.subr.mxu0 0.0
  %352 = vmatpush1.msra.mxu0 %v92
  %353 = vmatprep.subr.mxu0 0.0
  %354 = vmatpush2.msra.mxu0 %v123
  %355 = vmatprep.subr.mxu0 0.0
  %356 = vmatpush2.msra.mxu0 %v122
  %357 = vmatprep.subr.mxu0 0.0
  %358 = vmatpush2.msra.mxu0 %v121
  %359 = vmatprep.subr.mxu0 0.0
  %360 = vmatpush2.msra.mxu0 %v120
  %361 = vmatprep.subr.mxu0 0.0
  %362 = vmatpush2.msra.mxu0 %v119
  %363 = vmatprep.subr.mxu0 0.0
  %364 = vmatpush2.msra.mxu0 %v118
  %365 = vmatprep.subr.mxu0 0.0
  %366 = vmatpush2.msra.mxu0 %v117
  %367 = vmatprep.subr.mxu0 0.0
  %368 = vmatpush2.msra.mxu0 %v116
  %369 = vmatprep.subr.mxu0 0.0
  %370 = vmatpush2.msra.mxu0 %v115
  %371 = vmatprep.subr.mxu0 0.0
  %372 = vmatpush2.msra.mxu0 %v114
  %373 = vmatprep.subr.mxu0 0.0
  %374 = vmatpush2.msra.mxu0 %v113
  %375 = vmatprep.subr.mxu0 0.0
  %376 = vmatpush2.msra.mxu0 %v112
  %377 = vmatprep.subr.mxu0 0.0
  %378 = vmatpush2.msra.mxu0 %v111
  %379 = vmatprep.subr.mxu0 0.0
  %380 = vmatpush2.msra.mxu0 %v110
  %381 = vmatprep.subr.mxu0 0.0
  %382 = vmatpush2.msra.mxu0 %v109
  %383 = vmatprep.subr.mxu0 0.0
  %384 = vmatpush2.msra.mxu0 %v108
  %385 = vmatprep.mubr.f32.mxu0 %v171
  %386 = vmatmul.mubr.f32.gmra.mxu0 %v163
  %v387 = vpop.f32.mrf.mxu0
  %v388 = vadd.f32 %v318, %v387
  %v389 = vpop.f32.mrf.mxu0
  %390 = vdwg.mxu0
  %391 = vmatprep.subr.mxu0 0.0
  %392 = vmatpush1.msra.mxu0 0.0
  %393 = vmatprep.subr.mxu0 0.0
  %394 = vmatpush1.msra.mxu0 0.0
  %395 = vmatprep.subr.mxu0 0.0
  %396 = vmatpush1.msra.mxu0 0.0
  %397 = vmatprep.subr.mxu0 0.0
  %398 = vmatpush1.msra.mxu0 0.0
  %399 = vmatprep.subr.mxu0 0.0
  %400 = vmatpush1.msra.mxu0 0.0
  %401 = vmatprep.subr.mxu0 0.0
  %402 = vmatpush1.msra.mxu0 0.0
  %403 = vmatprep.subr.mxu0 0.0
  %404 = vmatpush1.msra.mxu0 0.0
  %405 = vmatprep.subr.mxu0 0.0
  %406 = vmatpush1.msra.mxu0 0.0
  %407 = vmatprep.subr.mxu0 0.0
  %408 = vmatpush1.msra.mxu0 0.0
  %409 = vmatprep.subr.mxu0 0.0
  %410 = vmatpush1.msra.mxu0 0.0
  %411 = vmatprep.subr.mxu0 0.0
  %412 = vmatpush1.msra.mxu0 %v129
  %413 = vmatprep.subr.mxu0 0.0
  %414 = vmatpush1.msra.mxu0 %v128
  %415 = vmatprep.subr.mxu0 0.0
  %416 = vmatpush1.msra.mxu0 %v127
  %417 = vmatprep.subr.mxu0 0.0
  %418 = vmatpush1.msra.mxu0 %v126
  %419 = vmatprep.subr.mxu0 0.0
  %420 = vmatpush1.msra.mxu0 %v125
  %421 = vmatprep.subr.mxu0 0.0
  %422 = vmatpush1.msra.mxu0 %v124
  %423 = vmatprep.subr.mxu0 0.0
  %424 = vmatpush2.msra.mxu0 0.0
  %425 = vmatprep.subr.mxu0 0.0
  %426 = vmatpush2.msra.mxu0 0.0
  %427 = vmatprep.subr.mxu0 0.0
  %428 = vmatpush2.msra.mxu0 0.0
  %429 = vmatprep.subr.mxu0 0.0
  %430 = vmatpush2.msra.mxu0 0.0
  %431 = vmatprep.subr.mxu0 0.0
  %432 = vmatpush2.msra.mxu0 0.0
  %433 = vmatprep.subr.mxu0 0.0
  %434 = vmatpush2.msra.mxu0 0.0
  %435 = vmatprep.subr.mxu0 0.0
  %436 = vmatpush2.msra.mxu0 0.0
  %437 = vmatprep.subr.mxu0 0.0
  %438 = vmatpush2.msra.mxu0 0.0
  %439 = vmatprep.subr.mxu0 0.0
  %440 = vmatpush2.msra.mxu0 0.0
  %441 = vmatprep.subr.mxu0 0.0
  %442 = vmatpush2.msra.mxu0 0.0
  %443 = vmatprep.subr.mxu0 0.0
  %444 = vmatpush2.msra.mxu0 0.0
  %445 = vmatprep.subr.mxu0 0.0
  %446 = vmatpush2.msra.mxu0 0.0
  %447 = vmatprep.subr.mxu0 0.0
  %448 = vmatpush2.msra.mxu0 0.0
  %449 = vmatprep.subr.mxu0 0.0
  %450 = vmatpush2.msra.mxu0 0.0
  %451 = vmatprep.subr.mxu0 0.0
  %452 = vmatpush2.msra.mxu0 0.0
  %453 = vmatprep.subr.mxu0 0.0
  %454 = vmatpush2.msra.mxu0 0.0
  %455 = vmatprep.mubr.f32.mxu0 0.0
  %456 = vmatmul.mubr.f32.gmra.mxu0 %v179
  %v457 = vpop.f32.mrf.mxu0
  %v458 = vadd.f32 %v388, %v457
  %v459 = vpop.f32.mrf.mxu0
  %460 = vdwg.mxu0
  %v461 = vmax.f32 %v458, 0.0
  %v462 = vld [vmem:[%s3] sm:$0xff]
  %v463 = vld [vmem:[%s3 + $0x8] sm:$0xff]
  %v464 = vld [vmem:[%s3 + $0x10] sm:$0xff]
  %v465 = vld [vmem:[%s3 + $0x18] sm:$0xff]
  %v466 = vld [vmem:[%s3 + $0x20] sm:$0xff]
  %v467 = vld [vmem:[%s3 + $0x28] sm:$0xff]
  %v468 = vld [vmem:[%s3 + $0x30] sm:$0xff]
  %v469 = vld [vmem:[%s3 + $0x38] sm:$0xff]
  %v470 = vld [vmem:[%s3 + $0x40] sm:$0xff]
  %v471 = vld [vmem:[%s3 + $0x48] sm:$0xff]
  %v472 = vld [vmem:[%s3 + $0x50] sm:$0xff]
  %v473 = vld [vmem:[%s3 + $0x58] sm:$0xff]
  %v474 = vld [vmem:[%s3 + $0x60] sm:$0xff]
  %v475 = vld [vmem:[%s3 + $0x68] sm:$0xff]
  %v476 = vld [vmem:[%s3 + $0x70] sm:$0xff]
  %v477 = vld [vmem:[%s3 + $0x78] sm:$0xff]
  %v478 = vld [vmem:[%s4] sm:$0x1]
  %v480 = vlaneseq
  %v481 = vshrl.u32 %v480, 7
  %v482 = vsub.s32 0, %v481
  %v483 = vrot.slane %v478, %v482
  %485 = vmatprep.subr.mxu0 0.0
  %486 = vmatpush1.msra.mxu0 %v477
  %487 = vmatprep.subr.mxu0 0.0
  %488 = vmatpush1.msra.mxu0 %v476
  %489 = vmatprep.subr.mxu0 0.0
  %490 = vmatpush1.msra.mxu0 %v475
  %491 = vmatprep.subr.mxu0 0.0
  %492 = vmatpush1.msra.mxu0 %v474
  %493 = vmatprep.subr.mxu0 0.0
  %494 = vmatpush1.msra.mxu0 %v473
  %495 = vmatprep.subr.mxu0 0.0
  %496 = vmatpush1.msra.mxu0 %v472
  %497 = vmatprep.subr.mxu0 0.0
  %498 = vmatpush1.msra.mxu0 %v471
  %499 = vmatprep.subr.mxu0 0.0
  %500 = vmatpush1.msra.mxu0 %v470
  %501 = vmatprep.subr.mxu0 0.0
  %502 = vmatpush1.msra.mxu0 %v469
  %503 = vmatprep.subr.mxu0 0.0
  %504 = vmatpush1.msra.mxu0 %v468
  %505 = vmatprep.subr.mxu0 0.0
  %506 = vmatpush1.msra.mxu0 %v467
  %507 = vmatprep.subr.mxu0 0.0
  %508 = vmatpush1.msra.mxu0 %v466
  %509 = vmatprep.subr.mxu0 0.0
  %510 = vmatpush1.msra.mxu0 %v465
  %511 = vmatprep.subr.mxu0 0.0
  %512 = vmatpush1.msra.mxu0 %v464
  %513 = vmatprep.subr.mxu0 0.0
  %514 = vmatpush1.msra.mxu0 %v463
  %515 = vmatprep.subr.mxu0 0.0
  %516 = vmatpush1.msra.mxu0 %v462
  %517 = vmatprep.subr.mxu0 0.0
  %518 = vmatpush2.msra.mxu0 0.0
  %519 = vmatprep.subr.mxu0 0.0
  %520 = vmatpush2.msra.mxu0 0.0
  %521 = vmatprep.subr.mxu0 0.0
  %522 = vmatpush2.msra.mxu0 0.0
  %523 = vmatprep.subr.mxu0 0.0
  %524 = vmatpush2.msra.mxu0 0.0
  %525 = vmatprep.subr.mxu0 0.0
  %526 = vmatpush2.msra.mxu0 0.0
  %527 = vmatprep.subr.mxu0 0.0
  %528 = vmatpush2.msra.mxu0 0.0
  %529 = vmatprep.subr.mxu0 0.0
  %530 = vmatpush2.msra.mxu0 0.0
  %531 = vmatprep.subr.mxu0 0.0
  %532 = vmatpush2.msra.mxu0 0.0
  %533 = vmatprep.subr.mxu0 0.0
  %534 = vmatpush2.msra.mxu0 0.0
  %535 = vmatprep.subr.mxu0 0.0
  %536 = vmatpush2.msra.mxu0 0.0
  %537 = vmatprep.subr.mxu0 0.0
  %538 = vmatpush2.msra.mxu0 0.0
  %539 = vmatprep.subr.mxu0 0.0
  %540 = vmatpush2.msra.mxu0 0.0
  %541 = vmatprep.subr.mxu0 0.0
  %542 = vmatpush2.msra.mxu0 0.0
  %543 = vmatprep.subr.mxu0 0.0
  %544 = vmatpush2.msra.mxu0 0.0
  %545 = vmatprep.subr.mxu0 0.0
  %546 = vmatpush2.msra.mxu0 0.0
  %547 = vmatprep.subr.mxu0 0.0
  %548 = vmatpush2.msra.mxu0 0.0
  %549 = vmatprep.mubr.f32.mxu0 0.0
  %550 = vmatmul.mubr.f32.gmra.mxu0 %v461
  %v551 = vpop.f32.mrf.mxu0
  %v552 = vadd.f32 %v483, %v551
  %v553 = vpop.f32.mrf.mxu0
  %554 = vdwg.mxu0
  %v555 = vmax.f32 %v552, 0.0
  %v556 = vld [vmem:[%s5] sm:$0xff]
  %v557 = vld [vmem:[%s5 + $0x8] sm:$0xff]
  %v558 = vld [vmem:[%s5 + $0x10] sm:$0xff]
  %v559 = vld [vmem:[%s5 + $0x18] sm:$0xff]
  %v560 = vld [vmem:[%s5 + $0x20] sm:$0xff]
  %v561 = vld [vmem:[%s5 + $0x28] sm:$0xff]
  %v562 = vld [vmem:[%s5 + $0x30] sm:$0xff]
  %v563 = vld [vmem:[%s5 + $0x38] sm:$0xff]
  %v564 = vld [vmem:[%s5 + $0x40] sm:$0xff]
  %v565 = vld [vmem:[%s5 + $0x48] sm:$0xff]
  %v566 = vld [vmem:[%s5 + $0x50] sm:$0xff]
  %v567 = vld [vmem:[%s5 + $0x58] sm:$0xff]
  %v568 = vld [vmem:[%s5 + $0x60] sm:$0xff]
  %v569 = vld [vmem:[%s5 + $0x68] sm:$0xff]
  %v570 = vld [vmem:[%s5 + $0x70] sm:$0xff]
  %v571 = vld [vmem:[%s5 + $0x78] sm:$0xff]
  %v572 = vld [vmem:[%s5 + $0x80] sm:$0xff]
  %v573 = vld [vmem:[%s5 + $0x88] sm:$0xff]
  %v574 = vld [vmem:[%s5 + $0x90] sm:$0xff]
  %v575 = vld [vmem:[%s5 + $0x98] sm:$0xff]
  %v576 = vld [vmem:[%s5 + $0xa0] sm:$0xff]
  %v577 = vld [vmem:[%s5 + $0xa8] sm:$0xff]
  %v578 = vld [vmem:[%s5 + $0xb0] sm:$0xff]
  %v579 = vld [vmem:[%s5 + $0xb8] sm:$0xff]
  %v580 = vld [vmem:[%s5 + $0xc0] sm:$0xff]
  %v581 = vld [vmem:[%s5 + $0xc8] sm:$0xff]
  %v582 = vld [vmem:[%s5 + $0xd0] sm:$0xff]
  %v583 = vld [vmem:[%s5 + $0xd8] sm:$0xff]
  %v584 = vld [vmem:[%s5 + $0xe0] sm:$0xff]
  %v585 = vld [vmem:[%s5 + $0xe8] sm:$0xff]
  %v586 = vld [vmem:[%s5 + $0xf0] sm:$0xff]
  %v587 = vld [vmem:[%s5 + $0xf8] sm:$0xff]
  %v588 = vld [vmem:[%s5 + $0x100] sm:$0xff]
  %v589 = vld [vmem:[%s5 + $0x108] sm:$0xff]
  %v590 = vld [vmem:[%s5 + $0x110] sm:$0xff]
  %v591 = vld [vmem:[%s5 + $0x118] sm:$0xff]
  %v592 = vld [vmem:[%s5 + $0x120] sm:$0xff]
  %v593 = vld [vmem:[%s5 + $0x128] sm:$0xff]
  %v594 = vld [vmem:[%s5 + $0x130] sm:$0xff]
  %v595 = vld [vmem:[%s5 + $0x138] sm:$0xff]
  %v596 = vld [vmem:[%s5 + $0x140] sm:$0xff]
  %v597 = vld [vmem:[%s5 + $0x148] sm:$0xff]
  %v598 = vld [vmem:[%s5 + $0x150] sm:$0xff]
  %v599 = vld [vmem:[%s5 + $0x158] sm:$0xff]
  %v600 = vld [vmem:[%s5 + $0x160] sm:$0xff]
  %v601 = vld [vmem:[%s5 + $0x168] sm:$0xff]
  %v602 = vld [vmem:[%s5 + $0x170] sm:$0xff]
  %v603 = vld [vmem:[%s5 + $0x178] sm:$0xff]
  %v604 = vld [vmem:[%s5 + $0x180] sm:$0xff]
  %v605 = vld [vmem:[%s5 + $0x188] sm:$0xff]
  %v606 = vld [vmem:[%s5 + $0x190] sm:$0xff]
  %v607 = vld [vmem:[%s5 + $0x198] sm:$0xff]
  %v608 = vld [vmem:[%s5 + $0x1a0] sm:$0xff]
  %v609 = vld [vmem:[%s5 + $0x1a8] sm:$0xff]
  %v610 = vld [vmem:[%s5 + $0x1b0] sm:$0xff]
  %v611 = vld [vmem:[%s5 + $0x1b8] sm:$0xff]
  %v612 = vld [vmem:[%s5 + $0x1c0] sm:$0xff]
  %v613 = vld [vmem:[%s5 + $0x1c8] sm:$0xff]
  %v614 = vld [vmem:[%s5 + $0x1d0] sm:$0xff]
  %v615 = vld [vmem:[%s5 + $0x1d8] sm:$0xff]
  %v616 = vld [vmem:[%s5 + $0x1e0] sm:$0xff]
  %v617 = vld [vmem:[%s5 + $0x1e8] sm:$0xff]
  %v618 = vld [vmem:[%s5 + $0x1f0] sm:$0xff]
  %v619 = vld [vmem:[%s5 + $0x1f8] sm:$0xff]
  %v620 = vld [vmem:[%s5 + $0x200] sm:$0xff]
  %v621 = vld [vmem:[%s5 + $0x208] sm:$0xff]
  %v622 = vld [vmem:[%s5 + $0x210] sm:$0xff]
  %v623 = vld [vmem:[%s5 + $0x218] sm:$0xff]
  %v624 = vld [vmem:[%s5 + $0x220] sm:$0xff]
  %v625 = vld [vmem:[%s5 + $0x228] sm:$0xff]
  %v626 = vld [vmem:[%s5 + $0x230] sm:$0xff]
  %v627 = vld [vmem:[%s5 + $0x238] sm:$0xff]
  %v628 = vld [vmem:[%s5 + $0x240] sm:$0xff]
  %v629 = vld [vmem:[%s5 + $0x248] sm:$0xff]
  %v630 = vld [vmem:[%s5 + $0x250] sm:$0xff]
  %v631 = vld [vmem:[%s5 + $0x258] sm:$0xff]
  %v632 = vld [vmem:[%s5 + $0x260] sm:$0xff]
  %v633 = vld [vmem:[%s5 + $0x268] sm:$0xff]
  %v634 = vld [vmem:[%s5 + $0x270] sm:$0xff]
  %v635 = vld [vmem:[%s5 + $0x278] sm:$0xff]
  %v636 = vld [vmem:[%s5 + $0x280] sm:$0xff]
  %v637 = vld [vmem:[%s5 + $0x288] sm:$0xff]
  %v638 = vld [vmem:[%s5 + $0x290] sm:$0xff]
  %v639 = vld [vmem:[%s5 + $0x298] sm:$0xff]
  %v640 = vld [vmem:[%s5 + $0x2a0] sm:$0xff]
  %v641 = vld [vmem:[%s5 + $0x2a8] sm:$0xff]
  %v642 = vld [vmem:[%s5 + $0x2b0] sm:$0xff]
  %v643 = vld [vmem:[%s5 + $0x2b8] sm:$0xff]
  %v644 = vld [vmem:[%s5 + $0x2c0] sm:$0xff]
  %v645 = vld [vmem:[%s5 + $0x2c8] sm:$0xff]
  %v646 = vld [vmem:[%s5 + $0x2d0] sm:$0xff]
  %v647 = vld [vmem:[%s5 + $0x2d8] sm:$0xff]
  %v648 = vld [vmem:[%s5 + $0x2e0] sm:$0xff]
  %v649 = vld [vmem:[%s5 + $0x2e8] sm:$0xff]
  %v650 = vld [vmem:[%s5 + $0x2f0] sm:$0xff]
  %v651 = vld [vmem:[%s5 + $0x2f8] sm:$0xff]
  %v652 = vld [vmem:[%s5 + $0x300] sm:$0xff]
  %v653 = vld [vmem:[%s5 + $0x308] sm:$0xff]
  %v654 = vld [vmem:[%s5 + $0x310] sm:$0xff]
  %v655 = vld [vmem:[%s5 + $0x318] sm:$0xff]
  %v656 = vld [vmem:[%s5 + $0x320] sm:$0xff]
  %v657 = vld [vmem:[%s5 + $0x328] sm:$0xff]
  %v658 = vld [vmem:[%s5 + $0x330] sm:$0xff]
  %v659 = vld [vmem:[%s5 + $0x338] sm:$0xff]
  %v660 = vld [vmem:[%s5 + $0x340] sm:$0xff]
  %v661 = vld [vmem:[%s5 + $0x348] sm:$0xff]
  %v662 = vld [vmem:[%s5 + $0x350] sm:$0xff]
  %v663 = vld [vmem:[%s5 + $0x358] sm:$0xff]
  %v664 = vld [vmem:[%s5 + $0x360] sm:$0xff]
  %v665 = vld [vmem:[%s5 + $0x368] sm:$0xff]
  %v666 = vld [vmem:[%s5 + $0x370] sm:$0xff]
  %v667 = vld [vmem:[%s5 + $0x378] sm:$0xff]
  %v668 = vld [vmem:[%s6] sm:$0x7f]
  %v670 = vlaneseq
  %v671 = vshrl.u32 %v670, 7
  %v672 = vsub.s32 0, %v671
  %v673 = vrot.slane %v668, %v672
  %v674 = vlaneseq
  %v675 = vshrl.u32 %v674, 7
  %v676 = vsub.s32 1, %v675
  %v677 = vrot.slane %v668, %v676
  %v678 = vlaneseq
  %v679 = vshrl.u32 %v678, 7
  %v680 = vsub.s32 2, %v679
  %v681 = vrot.slane %v668, %v680
  %v682 = vlaneseq
  %v683 = vshrl.u32 %v682, 7
  %v684 = vsub.s32 3, %v683
  %v685 = vrot.slane %v668, %v684
  %v686 = vlaneseq
  %v687 = vshrl.u32 %v686, 7
  %v688 = vsub.s32 4, %v687
  %v689 = vrot.slane %v668, %v688
  %v690 = vlaneseq
  %v691 = vshrl.u32 %v690, 7
  %v692 = vsub.s32 5, %v691
  %v693 = vrot.slane %v668, %v692
  %v694 = vlaneseq
  %v695 = vshrl.u32 %v694, 7
  %v696 = vsub.s32 6, %v695
  %v697 = vrot.slane %v668, %v696
  %705 = vmatprep.subr.mxu0 %v662
  %706 = vmatpush1.msra.mxu0 %v661
  %707 = vmatprep.subr.mxu0 %v655
  %708 = vmatpush1.msra.mxu0 %v654
  %709 = vmatprep.subr.mxu0 %v648
  %710 = vmatpush1.msra.mxu0 %v647
  %711 = vmatprep.subr.mxu0 %v641
  %712 = vmatpush1.msra.mxu0 %v640
  %713 = vmatprep.subr.mxu0 %v634
  %714 = vmatpush1.msra.mxu0 %v633
  %715 = vmatprep.subr.mxu0 %v627
  %716 = vmatpush1.msra.mxu0 %v626
  %717 = vmatprep.subr.mxu0 %v620
  %718 = vmatpush1.msra.mxu0 %v619
  %719 = vmatprep.subr.mxu0 %v613
  %720 = vmatpush1.msra.mxu0 %v612
  %721 = vmatprep.subr.mxu0 %v606
  %722 = vmatpush1.msra.mxu0 %v605
  %723 = vmatprep.subr.mxu0 %v599
  %724 = vmatpush1.msra.mxu0 %v598
  %725 = vmatprep.subr.mxu0 %v592
  %726 = vmatpush1.msra.mxu0 %v591
  %727 = vmatprep.subr.mxu0 %v585
  %728 = vmatpush1.msra.mxu0 %v584
  %729 = vmatprep.subr.mxu0 %v578
  %730 = vmatpush1.msra.mxu0 %v577
  %731 = vmatprep.subr.mxu0 %v571
  %732 = vmatpush1.msra.mxu0 %v570
  %733 = vmatprep.subr.mxu0 %v564
  %734 = vmatpush1.msra.mxu0 %v563
  %735 = vmatprep.subr.mxu0 %v557
  %736 = vmatpush1.msra.mxu0 %v556
  %737 = vmatprep.subr.mxu0 0.0
  %738 = vmatpush2.msra.mxu0 0.0
  %739 = vmatprep.subr.mxu0 0.0
  %740 = vmatpush2.msra.mxu0 0.0
  %741 = vmatprep.subr.mxu0 0.0
  %742 = vmatpush2.msra.mxu0 0.0
  %743 = vmatprep.subr.mxu0 0.0
  %744 = vmatpush2.msra.mxu0 0.0
  %745 = vmatprep.subr.mxu0 0.0
  %746 = vmatpush2.msra.mxu0 0.0
  %747 = vmatprep.subr.mxu0 0.0
  %748 = vmatpush2.msra.mxu0 0.0
  %749 = vmatprep.subr.mxu0 0.0
  %750 = vmatpush2.msra.mxu0 0.0
  %751 = vmatprep.subr.mxu0 0.0
  %752 = vmatpush2.msra.mxu0 0.0
  %753 = vmatprep.subr.mxu0 0.0
  %754 = vmatpush2.msra.mxu0 0.0
  %755 = vmatprep.subr.mxu0 0.0
  %756 = vmatpush2.msra.mxu0 0.0
  %757 = vmatprep.subr.mxu0 0.0
  %758 = vmatpush2.msra.mxu0 0.0
  %759 = vmatprep.subr.mxu0 0.0
  %760 = vmatpush2.msra.mxu0 0.0
  %761 = vmatprep.subr.mxu0 0.0
  %762 = vmatpush2.msra.mxu0 0.0
  %763 = vmatprep.subr.mxu0 0.0
  %764 = vmatpush2.msra.mxu0 0.0
  %765 = vmatprep.subr.mxu0 0.0
  %766 = vmatpush2.msra.mxu0 0.0
  %767 = vmatprep.subr.mxu0 0.0
  %768 = vmatpush2.msra.mxu0 0.0
  %769 = vmatprep.mubr.f32.mxu0 0.0
  %770 = vmatmul.mubr.f32.gmra.mxu0 %v555
  %v771 = vpop.f32.mrf.mxu0
  %v772 = vadd.f32 %v673, %v771
  %v773 = vpop.f32.mrf.mxu0
  %v774 = vadd.f32 %v677, %v773
  %775 = vdwg.mxu0
  %776 = vmatprep.subr.mxu0 %v664
  %777 = vmatpush1.msra.mxu0 %v663
  %778 = vmatprep.subr.mxu0 %v657
  %779 = vmatpush1.msra.mxu0 %v656
  %780 = vmatprep.subr.mxu0 %v650
  %781 = vmatpush1.msra.mxu0 %v649
  %782 = vmatprep.subr.mxu0 %v643
  %783 = vmatpush1.msra.mxu0 %v642
  %784 = vmatprep.subr.mxu0 %v636
  %785 = vmatpush1.msra.mxu0 %v635
  %786 = vmatprep.subr.mxu0 %v629
  %787 = vmatpush1.msra.mxu0 %v628
  %788 = vmatprep.subr.mxu0 %v622
  %789 = vmatpush1.msra.mxu0 %v621
  %790 = vmatprep.subr.mxu0 %v615
  %791 = vmatpush1.msra.mxu0 %v614
  %792 = vmatprep.subr.mxu0 %v608
  %793 = vmatpush1.msra.mxu0 %v607
  %794 = vmatprep.subr.mxu0 %v601
  %795 = vmatpush1.msra.mxu0 %v600
  %796 = vmatprep.subr.mxu0 %v594
  %797 = vmatpush1.msra.mxu0 %v593
  %798 = vmatprep.subr.mxu0 %v587
  %799 = vmatpush1.msra.mxu0 %v586
  %800 = vmatprep.subr.mxu0 %v580
  %801 = vmatpush1.msra.mxu0 %v579
  %802 = vmatprep.subr.mxu0 %v573
  %803 = vmatpush1.msra.mxu0 %v572
  %804 = vmatprep.subr.mxu0 %v566
  %805 = vmatpush1.msra.mxu0 %v565
  %806 = vmatprep.subr.mxu0 %v559
  %807 = vmatpush1.msra.mxu0 %v558
  %808 = vmatprep.subr.mxu0 0.0
  %809 = vmatpush2.msra.mxu0 0.0
  %810 = vmatprep.subr.mxu0 0.0
  %811 = vmatpush2.msra.mxu0 0.0
  %812 = vmatprep.subr.mxu0 0.0
  %813 = vmatpush2.msra.mxu0 0.0
  %814 = vmatprep.subr.mxu0 0.0
  %815 = vmatpush2.msra.mxu0 0.0
  %816 = vmatprep.subr.mxu0 0.0
  %817 = vmatpush2.msra.mxu0 0.0
  %818 = vmatprep.subr.mxu0 0.0
  %819 = vmatpush2.msra.mxu0 0.0
  %820 = vmatprep.subr.mxu0 0.0
  %821 = vmatpush2.msra.mxu0 0.0
  %822 = vmatprep.subr.mxu0 0.0
  %823 = vmatpush2.msra.mxu0 0.0
  %824 = vmatprep.subr.mxu0 0.0
  %825 = vmatpush2.msra.mxu0 0.0
  %826 = vmatprep.subr.mxu0 0.0
  %827 = vmatpush2.msra.mxu0 0.0
  %828 = vmatprep.subr.mxu0 0.0
  %829 = vmatpush2.msra.mxu0 0.0
  %830 = vmatprep.subr.mxu0 0.0
  %831 = vmatpush2.msra.mxu0 0.0
  %832 = vmatprep.subr.mxu0 0.0
  %833 = vmatpush2.msra.mxu0 0.0
  %834 = vmatprep.subr.mxu0 0.0
  %835 = vmatpush2.msra.mxu0 0.0
  %836 = vmatprep.subr.mxu0 0.0
  %837 = vmatpush2.msra.mxu0 0.0
  %838 = vmatprep.subr.mxu0 0.0
  %839 = vmatpush2.msra.mxu0 0.0
  %840 = vmatprep.mubr.f32.mxu0 0.0
  %841 = vmatmul.mubr.f32.gmra.mxu0 %v555
  %v842 = vpop.f32.mrf.mxu0
  %v843 = vadd.f32 %v681, %v842
  %v844 = vpop.f32.mrf.mxu0
  %v845 = vadd.f32 %v685, %v844
  %846 = vdwg.mxu0
  %847 = vmatprep.subr.mxu0 %v666
  %848 = vmatpush1.msra.mxu0 %v665
  %849 = vmatprep.subr.mxu0 %v659
  %850 = vmatpush1.msra.mxu0 %v658
  %851 = vmatprep.subr.mxu0 %v652
  %852 = vmatpush1.msra.mxu0 %v651
  %853 = vmatprep.subr.mxu0 %v645
  %854 = vmatpush1.msra.mxu0 %v644
  %855 = vmatprep.subr.mxu0 %v638
  %856 = vmatpush1.msra.mxu0 %v637
  %857 = vmatprep.subr.mxu0 %v631
  %858 = vmatpush1.msra.mxu0 %v630
  %859 = vmatprep.subr.mxu0 %v624
  %860 = vmatpush1.msra.mxu0 %v623
  %861 = vmatprep.subr.mxu0 %v617
  %862 = vmatpush1.msra.mxu0 %v616
  %863 = vmatprep.subr.mxu0 %v610
  %864 = vmatpush1.msra.mxu0 %v609
  %865 = vmatprep.subr.mxu0 %v603
  %866 = vmatpush1.msra.mxu0 %v602
  %867 = vmatprep.subr.mxu0 %v596
  %868 = vmatpush1.msra.mxu0 %v595
  %869 = vmatprep.subr.mxu0 %v589
  %870 = vmatpush1.msra.mxu0 %v588
  %871 = vmatprep.subr.mxu0 %v582
  %872 = vmatpush1.msra.mxu0 %v581
  %873 = vmatprep.subr.mxu0 %v575
  %874 = vmatpush1.msra.mxu0 %v574
  %875 = vmatprep.subr.mxu0 %v568
  %876 = vmatpush1.msra.mxu0 %v567
  %877 = vmatprep.subr.mxu0 %v561
  %878 = vmatpush1.msra.mxu0 %v560
  %879 = vmatprep.subr.mxu0 0.0
  %880 = vmatpush2.msra.mxu0 0.0
  %881 = vmatprep.subr.mxu0 0.0
  %882 = vmatpush2.msra.mxu0 0.0
  %883 = vmatprep.subr.mxu0 0.0
  %884 = vmatpush2.msra.mxu0 0.0
  %885 = vmatprep.subr.mxu0 0.0
  %886 = vmatpush2.msra.mxu0 0.0
  %887 = vmatprep.subr.mxu0 0.0
  %888 = vmatpush2.msra.mxu0 0.0
  %889 = vmatprep.subr.mxu0 0.0
  %890 = vmatpush2.msra.mxu0 0.0
  %891 = vmatprep.subr.mxu0 0.0
  %892 = vmatpush2.msra.mxu0 0.0
  %893 = vmatprep.subr.mxu0 0.0
  %894 = vmatpush2.msra.mxu0 0.0
  %895 = vmatprep.subr.mxu0 0.0
  %896 = vmatpush2.msra.mxu0 0.0
  %897 = vmatprep.subr.mxu0 0.0
  %898 = vmatpush2.msra.mxu0 0.0
  %899 = vmatprep.subr.mxu0 0.0
  %900 = vmatpush2.msra.mxu0 0.0
  %901 = vmatprep.subr.mxu0 0.0
  %902 = vmatpush2.msra.mxu0 0.0
  %903 = vmatprep.subr.mxu0 0.0
  %904 = vmatpush2.msra.mxu0 0.0
  %905 = vmatprep.subr.mxu0 0.0
  %906 = vmatpush2.msra.mxu0 0.0
  %907 = vmatprep.subr.mxu0 0.0
  %908 = vmatpush2.msra.mxu0 0.0
  %909 = vmatprep.subr.mxu0 0.0
  %910 = vmatpush2.msra.mxu0 0.0
  %911 = vmatprep.mubr.f32.mxu0 0.0
  %912 = vmatmul.mubr.f32.gmra.mxu0 %v555
  %v913 = vpop.f32.mrf.mxu0
  %v914 = vadd.f32 %v689, %v913
  %v915 = vpop.f32.mrf.mxu0
  %v916 = vadd.f32 %v693, %v915
  %917 = vdwg.mxu0
  %918 = vmatprep.subr.mxu0 0.0
  %919 = vmatpush1.msra.mxu0 %v667
  %920 = vmatprep.subr.mxu0 0.0
  %921 = vmatpush1.msra.mxu0 %v660
  %922 = vmatprep.subr.mxu0 0.0
  %923 = vmatpush1.msra.mxu0 %v653
  %924 = vmatprep.subr.mxu0 0.0
  %925 = vmatpush1.msra.mxu0 %v646
  %926 = vmatprep.subr.mxu0 0.0
  %927 = vmatpush1.msra.mxu0 %v639
  %928 = vmatprep.subr.mxu0 0.0
  %929 = vmatpush1.msra.mxu0 %v632
  %930 = vmatprep.subr.mxu0 0.0
  %931 = vmatpush1.msra.mxu0 %v625
  %932 = vmatprep.subr.mxu0 0.0
  %933 = vmatpush1.msra.mxu0 %v618
  %934 = vmatprep.subr.mxu0 0.0
  %935 = vmatpush1.msra.mxu0 %v611
  %936 = vmatprep.subr.mxu0 0.0
  %937 = vmatpush1.msra.mxu0 %v604
  %938 = vmatprep.subr.mxu0 0.0
  %939 = vmatpush1.msra.mxu0 %v597
  %940 = vmatprep.subr.mxu0 0.0
  %941 = vmatpush1.msra.mxu0 %v590
  %942 = vmatprep.subr.mxu0 0.0
  %943 = vmatpush1.msra.mxu0 %v583
  %944 = vmatprep.subr.mxu0 0.0
  %945 = vmatpush1.msra.mxu0 %v576
  %946 = vmatprep.subr.mxu0 0.0
  %947 = vmatpush1.msra.mxu0 %v569
  %948 = vmatprep.subr.mxu0 0.0
  %949 = vmatpush1.msra.mxu0 %v562
  %950 = vmatprep.subr.mxu0 0.0
  %951 = vmatpush2.msra.mxu0 0.0
  %952 = vmatprep.subr.mxu0 0.0
  %953 = vmatpush2.msra.mxu0 0.0
  %954 = vmatprep.subr.mxu0 0.0
  %955 = vmatpush2.msra.mxu0 0.0
  %956 = vmatprep.subr.mxu0 0.0
  %957 = vmatpush2.msra.mxu0 0.0
  %958 = vmatprep.subr.mxu0 0.0
  %959 = vmatpush2.msra.mxu0 0.0
  %960 = vmatprep.subr.mxu0 0.0
  %961 = vmatpush2.msra.mxu0 0.0
  %962 = vmatprep.subr.mxu0 0.0
  %963 = vmatpush2.msra.mxu0 0.0
  %964 = vmatprep.subr.mxu0 0.0
  %965 = vmatpush2.msra.mxu0 0.0
  %966 = vmatprep.subr.mxu0 0.0
  %967 = vmatpush2.msra.mxu0 0.0
  %968 = vmatprep.subr.mxu0 0.0
  %969 = vmatpush2.msra.mxu0 0.0
  %970 = vmatprep.subr.mxu0 0.0
  %971 = vmatpush2.msra.mxu0 0.0
  %972 = vmatprep.subr.mxu0 0.0
  %973 = vmatpush2.msra.mxu0 0.0
  %974 = vmatprep.subr.mxu0 0.0
  %975 = vmatpush2.msra.mxu0 0.0
  %976 = vmatprep.subr.mxu0 0.0
  %977 = vmatpush2.msra.mxu0 0.0
  %978 = vmatprep.subr.mxu0 0.0
  %979 = vmatpush2.msra.mxu0 0.0
  %980 = vmatprep.subr.mxu0 0.0
  %981 = vmatpush2.msra.mxu0 0.0
  %982 = vmatprep.mubr.f32.mxu0 0.0
  %983 = vmatmul.mubr.f32.gmra.mxu0 %v555
  %v984 = vpop.f32.mrf.mxu0
  %v985 = vadd.f32 %v697, %v984
  %v986 = vpop.f32.mrf.mxu0
  %987 = vdwg.mxu0
  %v995 = vcombine.low %v772, %v774
  %v996 = vcombine.low %v843, %v845
  %v998 = vunpack.c.l.s4 1983009808
  %v999 = vunpack.c.0.s8 %v998
  %v1000 = vlaneseq
  %v1001 = vshrl.u32 %v1000, 7
  %v1002 = vsub.s32 %v999, %v1001
  %v1003 = vrot.slane %v995, %v1002
  %v1005 = vunpack.c.l.s4 1983009808
  %v1006 = vunpack.c.0.s8 %v1005
  %v1007 = vlaneseq
  %v1008 = vshrl.u32 %v1007, 7
  %v1009 = vsub.s32 %v1006, %v1008
  %v1010 = vrot.slane %v996, %v1009
  %v1011 = vcombine.low %v1003, %v1010
  %v1012 = vcombine.low %v914, %v916
  %v1014 = vunpack.c.l.s4 1983009808
  %v1015 = vunpack.c.0.s8 %v1014
  %v1016 = vlaneseq
  %v1017 = vshrl.u32 %v1016, 7
  %v1018 = vsub.s32 %v1015, %v1017
  %v1019 = vrot.slane %v1012, %v1018
  %v1021 = vunpack.c.l.s4 1983009808
  %v1022 = vunpack.c.0.s8 %v1021
  %v1023 = vlaneseq
  %v1024 = vshrl.u32 %v1023, 7
  %v1025 = vsub.s32 %v1022, %v1024
  %v1026 = vrot.slane %v985, %v1025
  %v1027 = vcombine.low %v1019, %v1026
  %1030 = vst [vmem:[%s7] sm:$0xff] %v1011
  %vm1031 = vcmask 1041408
  %vm1032 = vcmask 1043458
  %vm1033 = vmor %vm1032, %vm1031
  %vm1034 = vcmask 390148
  %vm1035 = vmor %vm1034, %vm1033
  %1036 = vst.msk [vmem:[%s7 + $0x8] sm:$0x3f] %vm1035, %v1027
  // Predicated region
  $region30: #{saccade_shift_forward.1} parent=0 // pred_check
    _
  $region31: #{saccade_shift_forward.1} parent=0 // pred_check_branch
    %1038 = sbr.rel (0) target = $region33
  $region32: #{saccade_shift_forward.1} parent=0 // pred_region
    _
  $region33: #{saccade_shift_forward.1} parent=0 // pred_fallthru
    _
  // Predicated region
  $region34: #{saccade_shift_forward.1} parent=0 // pred_check
    _
  $region35: #{saccade_shift_forward.1} parent=0 // pred_check_branch
    %1040 = sbr.rel (0) target = $region37
  $region36: #{saccade_shift_forward.1} parent=0 // pred_region
    _
  $region37: #{saccade_shift_forward.1} parent=0 // pred_fallthru
    _

</llo_original>
